<compile_context>
chip_gen: v7x
topology: tpu7x:2x2x1
jax: 0.10.0
libtpu: 0.0.40
codegen_flags: <defaults>
</compile_context>

<pallas_src>
import functools

import jax
import jax.numpy as jnp
from jax import lax
from jax.experimental import pallas as pl
from jax.experimental.pallas import tpu as pltpu


NUM_CLASSES = 21
_FUSED_VMEM_BUDGET = 15 << 20  # max bytes for the resident (VMEM) input slab per call


def _round_up(x, m):
    return (x + m - 1) // m * m


def _lane(n):
    return _round_up(n, 128)


# ---------------------------------------------------------------------------
# Pallas kernels
# ---------------------------------------------------------------------------
def _conv3x3_kernel(a_ref, w_ref, b_ref, o_ref, *, cg, row_stride, relu):
    """Fused 3x3 / stride-1 / pad-1 conv tile.

    a_ref : (rows, cg)      bf16 dx-expanded, row-flattened input, VMEM resident.
    w_ref : (3*cg, C_out)   bf16, row groups ordered by dy tap.
    b_ref : (1, C_out)      f32 bias.
    o_ref : (tm, C_out)     output tile i covers flattened output rows [i*tm, i*tm+tm).
    Output row r needs input rows r, r+row_stride, r+2*row_stride (the 3 dy taps).
    """
    i = pl.program_id(0)
    tm = o_ref.shape[0]
    base = pl.multiple_of(i * tm, tm)
    acc = jnp.dot(a_ref[pl.ds(base, tm), :], w_ref[0:cg, :],
                  preferred_element_type=jnp.float32)
    acc = acc + jnp.dot(a_ref[pl.ds(base + row_stride, tm), :], w_ref[cg:2 * cg, :],
                        preferred_element_type=jnp.float32)
    acc = acc + jnp.dot(a_ref[pl.ds(base + 2 * row_stride, tm), :], w_ref[2 * cg:3 * cg, :],
                        preferred_element_type=jnp.float32)
    out = acc + b_ref[...]
    if relu:
        out = jnp.maximum(out, 0.0)
    o_ref[...] = out.astype(o_ref.dtype)


def _mm_kernel_1k(a_ref, b_ref, bias_ref, o_ref, *, relu):
    """Single-K-block matmul: no accumulator scratch, no pl.when."""
    out = jnp.dot(a_ref[...], b_ref[...], preferred_element_type=jnp.float32) + bias_ref[...]
    if relu:
        out = jnp.maximum(out, 0.0)
    o_ref[...] = out.astype(o_ref.dtype)


def _mm_kernel_mk(a_ref, b_ref, bias_ref, o_ref, acc_ref, *, relu):
    """Multi-K-block matmul with f32 accumulator scratch (fc6 only)."""
    k = pl.program_id(2)

    @pl.when(k == 0)
    def _():
        acc_ref[...] = jnp.zeros_like(acc_ref)

    acc_ref[...] += jnp.dot(a_ref[...], b_ref[...], preferred_element_type=jnp.float32)

    @pl.when(k == pl.num_programs(2) - 1)
    def _():
        out = acc_ref[...] + bias_ref[...]
        if relu:
            out = jnp.maximum(out, 0.0)
        o_ref[...] = out.astype(o_ref.dtype)


# ---------------------------------------------------------------------------
# Tiling heuristics
# ---------------------------------------------------------------------------
def _kn_tiles(K, N, gemv):
    """K/N tile sizes + padded K/N (shared by init-time weight prep and forward)."""
    Kp0 = _round_up(K, 128)
    Np0 = _round_up(N, 128)
    if gemv:  # M ~ 1: pure weight streaming, use big tiles, keep >= 2 N blocks when wide
        if Kp0 <= 4096:
            tk = Kp0
        elif Kp0 % 3584 == 0:
            tk = 3584
        else:
            tk = 2048
        tn = min(1024, Np0)
    else:
        tk = Kp0 if Kp0 <= 4608 else 2048
        tn = min(512, Np0)
    return tk, tn, _round_up(Kp0, tk), _round_up(Np0, tn)


def _tm_for(M, gemv):
    if gemv:
        return 16
    return min(512, max(16, _round_up(M, 256)))


# ---------------------------------------------------------------------------
# Matmul wrapper (weights already prepared/padded at init)
# ---------------------------------------------------------------------------
def matmul_prepped(a, w_mat, bias_p, *, n_out, gemv, relu, out_dtype):
    """(M,K) @ prepared (Kp,Np) + bias, fused ReLU, on the MXU."""
    M, K = a.shape
    Kp, Np = w_mat.shape
    tk, tn, Kp2, Np2 = _kn_tiles(K, n_out, gemv)
    assert (Kp, Np) == (Kp2, Np2), "weight was prepared with a different tiling"
    tm = _tm_for(M, gemv)
    Mp = _round_up(M, tm)

    a_p = a.astype(jnp.bfloat16)
    if (Mp, Kp) != (M, K):
        a_p = jnp.pad(a_p, ((0, Mp - M), (0, Kp - K)))

    nk = Kp // tk
    out_bytes = jnp.dtype(out_dtype).itemsize
    vmem = (2 * (tm * tk + tk * tn) * 2 + 2 * tm * tn * out_bytes + 2 * tn * 4
            + (tm * tn * 4 if nk > 1 else 0) + (8 << 20))
    vmem = int(min(vmem, 60 << 20))

    if nk == 1:
        out = pl.pallas_call(
            functools.partial(_mm_kernel_1k, relu=relu),
            out_shape=jax.ShapeDtypeStruct((Mp, Np), out_dtype),
            grid_spec=pltpu.PrefetchScalarGridSpec(
                num_scalar_prefetch=0,
                grid=(Mp // tm, Np // tn),
                in_specs=[pl.BlockSpec((tm, tk), lambda i, j: (i, 0)),
                          pl.BlockSpec((tk, tn), lambda i, j: (0, j)),
                          pl.BlockSpec((1, tn), lambda i, j: (0, j))],
                out_specs=pl.BlockSpec((tm, tn), lambda i, j: (i, j))),
            compiler_params=pltpu.CompilerParams(
                dimension_semantics=("parallel", "parallel"),
                vmem_limit_bytes=vmem),
        )(a_p, w_mat, bias_p)
    else:
        out = pl.pallas_call(
            functools.partial(_mm_kernel_mk, relu=relu),
            out_shape=jax.ShapeDtypeStruct((Mp, Np), out_dtype),
            grid_spec=pltpu.PrefetchScalarGridSpec(
                num_scalar_prefetch=0,
                grid=(Mp // tm, Np // tn, nk),
                in_specs=[pl.BlockSpec((tm, tk), lambda i, j, k: (i, k)),
                          pl.BlockSpec((tk, tn), lambda i, j, k: (k, j)),
                          pl.BlockSpec((1, tn), lambda i, j, k: (0, j))],
                out_specs=pl.BlockSpec((tm, tn), lambda i, j, k: (i, j)),
                scratch_shapes=[pltpu.VMEM((tm, tn), jnp.float32)]),
            compiler_params=pltpu.CompilerParams(
                dimension_semantics=("parallel", "parallel", "arbitrary"),
                vmem_limit_bytes=vmem),
        )(a_p, w_mat, bias_p)
    return out[:M, :n_out]


# ---------------------------------------------------------------------------
# Fused 3x3 conv (stride 1, pad 1) -- no im2col matrix in HBM
# ---------------------------------------------------------------------------
def _conv3x3_band(xp_band, w_mat, bias_p, c_out, relu, out_dtype):
    """xp_band: (Hb+2, Wp+2, C) bf16 spatially-padded band -> (Hb, Wp, c_out)."""
    Hb2, _, C = xp_band.shape
    Hb = Hb2 - 2
    Wp = xp_band.shape[1] - 2
    cg = _round_up(3 * C, 16)

    # dx-expansion only (3x); dy taps handled in-kernel via aligned row offsets.
    a3 = jnp.concatenate([xp_band[:, dx:dx + Wp, :] for dx in range(3)], axis=-1)
    if cg != 3 * C:
        a3 = jnp.pad(a3, ((0, 0), (0, 0), (0, cg - 3 * C)))
    a3 = a3.reshape(Hb2 * Wp, cg)

    M = Hb * Wp
    tm = _tm_for(M, gemv=False)
    Mp = _round_up(M, tm)
    rows = Mp + 2 * Wp                      # keeps every in-kernel tap read in bounds
    a3 = jnp.pad(a3, ((0, rows - Hb2 * Wp), (0, 0)))

    out_bytes = jnp.dtype(out_dtype).itemsize
    vmem = (2 * rows * _lane(cg) * 2 + 2 * 3 * cg * _lane(c_out) * 2
            + 2 * tm * _lane(c_out) * out_bytes + tm * _lane(c_out) * 4
            + 2 * tm * _lane(cg) * 2 + (8 << 20))
    vmem = int(min(vmem, 60 << 20))

    out = pl.pallas_call(
        functools.partial(_conv3x3_kernel, cg=cg, row_stride=Wp, relu=relu),
        out_shape=jax.ShapeDtypeStruct((Mp, c_out), out_dtype),
        grid_spec=pltpu.PrefetchScalarGridSpec(
            num_scalar_prefetch=0,
            grid=(Mp // tm,),
            in_specs=[pl.BlockSpec(a3.shape, lambda i: (0, 0)),      # whole slab resident
                      pl.BlockSpec(w_mat.shape, lambda i: (0, 0)),
                      pl.BlockSpec(bias_p.shape, lambda i: (0, 0))],
            out_specs=pl.BlockSpec((tm, c_out), lambda i: (i, 0))),
        compiler_params=pltpu.CompilerParams(
            dimension_semantics=("parallel",),
            vmem_limit_bytes=vmem),
    )(a3, w_mat, bias_p)
    return out[:M].reshape(Hb, Wp, c_out)


def conv3x3_fused(x, w_mat, bias_p, *, relu=True, out_dtype=jnp.bfloat16):
    """3x3 conv, stride 1, pad 1.  x: (N,H,W,C) -> (N,H,W,C_out)."""
    N, H, W, C = x.shape
    c_out = w_mat.shape[1]
    Wp = _round_up(W, 16)
    cg = _round_up(3 * C, 16)

    # split into row bands if the resident slab would be too large (only conv1_2 at 224^2)
    slab = (H + 2) * Wp * _lane(cg) * 2
    bands = min(max(1, -(-slab // _FUSED_VMEM_BUDGET)), H)
    band_h = -(-H // bands)

    x = x.astype(jnp.bfloat16)
    outs = []
    for n in range(N):
        xp = jnp.pad(x[n], ((1, 1), (1, 1 + (Wp - W)), (0, 0)))
        pieces = []
        r0 = 0
        while r0 < H:
            r1 = min(H, r0 + band_h)
            pieces.append(_conv3x3_band(xp[r0:r1 + 2], w_mat, bias_p, c_out, relu, out_dtype))
            r0 = r1
        y = pieces[0] if len(pieces) == 1 else jnp.concatenate(pieces, axis=0)
        outs.append(y[:, :W, :])
    return jnp.stack(outs, axis=0)


# ---------------------------------------------------------------------------
# Other forward-pass glue (XLA)
# ---------------------------------------------------------------------------
def maxpool2x2(x):
    n, h, w, c = x.shape
    return x.reshape(n, h // 2, 2, w // 2, 2, c).max(axis=(2, 4))


def bilinear_resize(x, hw):
    # F.interpolate(mode='bilinear', align_corners=False) equivalent for upsampling.
    n, _, _, c = x.shape
    return jax.image.resize(x, (n, hw[0], hw[1], c), method="bilinear")


def conv1x1_prepped(x, w_mat, bias_p, *, n_out, gemv, relu, out_dtype):
    n, h, w, c = x.shape
    out = matmul_prepped(x.reshape(n * h * w, c), w_mat, bias_p,
                         n_out=n_out, gemv=gemv, relu=relu, out_dtype=out_dtype)
    return out.reshape(n, h, w, n_out)


def conv_transpose_subpixel_prepped(x, w_mat, bias_p, *, c_out, stride):
    """ConvTranspose2d(k=2s, stride=s, pad=s/2) via a 3x3 conv producing all s*s phases."""
    n, h, w, _ = x.shape
    s = stride
    y = conv3x3_fused(x, w_mat, bias_p, relu=False, out_dtype=jnp.float32)  # (N,H,W,s*s*c_out)
    y = y.reshape(n, h, w, s, s, c_out)
    y = jnp.transpose(y, (0, 1, 3, 2, 4, 5)).reshape(n, h * s, w * s, c_out)
    return y


# ---------------------------------------------------------------------------
# Parameter preparation (all weight reformatting happens here, once)
# ---------------------------------------------------------------------------
def _he_conv(key, c_out, c_in, kh, kw):
    fan_in = c_in * kh * kw
    w = jax.random.normal(key, (c_out, c_in, kh, kw), jnp.float32) * (2.0 / fan_in) ** 0.5
    return w, jnp.zeros((c_out,), jnp.float32)


def prepare_conv3x3(w, b):
    """torch (C_out,C_in,3,3) -> (3*cg, C_out) bf16 matmul weight for the fused kernel."""
    c_out, c_in, _, _ = w.shape
    cg = _round_up(3 * c_in, 16)
    wt = jnp.transpose(w, (2, 3, 1, 0)).reshape(3, 3 * c_in, c_out)   # (dy, dx*ci, co)
    wt = jnp.pad(wt, ((0, 0), (0, cg - 3 * c_in), (0, 0))).reshape(3 * cg, c_out)
    return wt.astype(jnp.bfloat16), b.reshape(1, -1).astype(jnp.float32)


def prepare_matmul(w, b, *, gemv):
    """torch conv weight used as a plain matmul (1x1 conv or kxk VALID conv -> 1x1 out)."""
    c_out, c_in, kh, kw = w.shape
    K = kh * kw * c_in
    wm = jnp.transpose(w, (2, 3, 1, 0)).reshape(K, c_out)
    _, _, Kp, Np = _kn_tiles(K, c_out, gemv)
    wm = jnp.pad(wm, ((0, Kp - K), (0, Np - c_out))).astype(jnp.bfloat16)
    bias = jnp.pad(b.reshape(1, -1), ((0, 0), (0, Np - c_out))).astype(jnp.float32)
    return wm, bias


def prepare_conv_transpose_subpixel(w, b, *, stride):
    """torch ConvTranspose2d weight (C_in,C_out,2s,2s), pad=s/2 -> fused-3x3 weight for all phases."""
    c_in, c_out, kh, kw = w.shape
    s = stride
    half = s // 2
    assert kh == kw == 2 * s and 2 * half == s
    r = jnp.arange(s)
    ky = jnp.stack([r + 3 * half, r + half, r - half], axis=0)            # (tap, phase)
    valid = jnp.stack([r < half, jnp.ones_like(r, dtype=bool), r >= half], axis=0)
    kyc = jnp.clip(ky, 0, kh - 1)
    wg = w[:, :, kyc, :][:, :, :, :, kyc]                                 # (ci,co,ty,ry,tx,rx)
    vf = valid.astype(w.dtype)
    wg = wg * (vf[:, :, None, None] * vf[None, None, :, :])[None, None]
    wm = jnp.transpose(wg, (2, 4, 0, 3, 5, 1)).reshape(3, 3 * c_in, s * s * c_out)
    cg = _round_up(3 * c_in, 16)
    wm = jnp.pad(wm, ((0, 0), (0, cg - 3 * c_in), (0, 0))).reshape(3 * cg, s * s * c_out)
    bias = jnp.tile(b, s * s).reshape(1, -1)
    return wm.astype(jnp.bfloat16), bias.astype(jnp.float32)


def init_params(key, num_classes=NUM_CLASSES):
    # TODO(synk): pretrained torchvision VGG16 IMAGENET1K_V1 weights cannot be fetched
    # in-script; layouts/shapes are identical, values are deterministic He-init random.
    vgg_cfg = {
        "conv1": [(3, 64), (64, 64)],
        "conv2": [(64, 128), (128, 128)],
        "conv3": [(128, 256), (256, 256), (256, 256)],
        "conv4": [(256, 512), (512, 512), (512, 512)],
        "conv5": [(512, 512), (512, 512), (512, 512)],
    }
    params = {}
    i = 0
    for name, convs in vgg_cfg.items():
        blk = []
        for c_in, c_out in convs:
            blk.append(prepare_conv3x3(*_he_conv(jax.random.fold_in(key, i), c_out, c_in, 3, 3)))
            i += 1
        params[name] = blk
    params["fc6"] = prepare_matmul(*_he_conv(jax.random.fold_in(key, 100), 4096, 512, 7, 7), gemv=True)
    params["fc7"] = prepare_matmul(*_he_conv(jax.random.fold_in(key, 101), 4096, 4096, 1, 1), gemv=True)
    params["score_fr"] = prepare_matmul(
        *_he_conv(jax.random.fold_in(key, 102), num_classes, 4096, 1, 1), gemv=True)
    params["score_pool3"] = prepare_matmul(
        *_he_conv(jax.random.fold_in(key, 103), num_classes, 256, 1, 1), gemv=False)
    params["score_pool4"] = prepare_matmul(
        *_he_conv(jax.random.fold_in(key, 104), num_classes, 512, 1, 1), gemv=False)
    wt = jax.random.normal(jax.random.fold_in(key, 105),
                           (num_classes, num_classes, 16, 16), jnp.float32) * 0.01
    params["upscore8"] = prepare_conv_transpose_subpixel(
        wt, jnp.zeros((num_classes,), jnp.float32), stride=8)
    return params


# ---------------------------------------------------------------------------
# FCN-8s forward (mode='8s' only; '16s' branch not implemented)
# ---------------------------------------------------------------------------
def _fcn8s_forward(params, x_nchw, *, num_classes):
    x = jnp.transpose(x_nchw, (0, 2, 3, 1)).astype(jnp.bfloat16)   # NCHW -> NHWC
    feats = x
    pool = {}
    for name in ("conv1", "conv2", "conv3", "conv4", "conv5"):
        for w_mat, bias in params[name]:
            feats = conv3x3_fused(feats, w_mat, bias, relu=True)
        feats = maxpool2x2(feats)
        pool[name] = feats
    x3, x4, x5 = pool["conv3"], pool["conv4"], pool["conv5"]

    # fc6: 7x7 VALID conv on the 7x7 /32 map -> one GEMV
    n, h5, w5, c5 = x5.shape
    h6 = matmul_prepped(x5.reshape(n, h5 * w5 * c5), *params["fc6"],
                        n_out=4096, gemv=True, relu=True, out_dtype=jnp.bfloat16)
    # TODO(synk): Dropout2d is modeled as inference-mode identity (no stochastic drop).
    h7 = matmul_prepped(h6, *params["fc7"],
                        n_out=4096, gemv=True, relu=True, out_dtype=jnp.bfloat16)
    score_fr = matmul_prepped(h7, *params["score_fr"], n_out=num_classes, gemv=True,
                              relu=False, out_dtype=jnp.float32).reshape(n, 1, 1, num_classes)

    score_pool4 = conv1x1_prepped(x4, *params["score_pool4"], n_out=num_classes,
                                  gemv=False, relu=False, out_dtype=jnp.float32)
    score_pool3 = conv1x1_prepped(x3, *params["score_pool3"], n_out=num_classes,
                                  gemv=False, relu=False, out_dtype=jnp.float32)

    upscore2 = bilinear_resize(score_fr, score_pool4.shape[1:3])
    fuse_pool4 = upscore2 + score_pool4
    upscore2_pool4 = bilinear_resize(fuse_pool4, score_pool3.shape[1:3])
    fuse_pool3 = upscore2_pool4 + score_pool3

    upscore8 = conv_transpose_subpixel_prepped(fuse_pool3, *params["upscore8"],
                                               c_out=num_classes, stride=8)
    if upscore8.shape[1:3] != x_nchw.shape[2:4]:
        upscore8 = bilinear_resize(upscore8, x_nchw.shape[2:4])
    return jnp.transpose(upscore8, (0, 3, 1, 2))                   # NHWC -> NCHW


# ---------------------------------------------------------------------------
# Reference for the transposed-conv self-check
# ---------------------------------------------------------------------------
def _conv_transpose_ref(x_nhwc, w, b, *, stride, padding):
    """PyTorch ConvTranspose2d reference via dilated conv.  w: (C_in,C_out,k,k)."""
    k = w.shape[2]
    rhs = jnp.transpose(w[:, :, ::-1, ::-1], (2, 3, 0, 1))          # (kh,kw,ci,co)
    y = lax.conv_general_dilated(
        x_nhwc, rhs, window_strides=(1, 1),
        padding=[(k - 1 - padding, k - 1 - padding)] * 2,
        lhs_dilation=(stride, stride),
        dimension_numbers=("NHWC", "HWIO", "NHWC"))
    return y + b.reshape(1, 1, 1, -1)


if __name__ == "__main__":
    num_classes = NUM_CLASSES

    # --- tiny numerical self-check of the sub-pixel transposed-conv path ---
    kt = jax.random.PRNGKey(1)
    tw = jax.random.normal(jax.random.fold_in(kt, 0), (3, 2, 4, 4), jnp.float32) * 0.1
    tb = jax.random.normal(jax.random.fold_in(kt, 1), (2,), jnp.float32) * 0.1
    tx = jax.random.normal(jax.random.fold_in(kt, 2), (1, 4, 5, 3), jnp.float32)
    wm_t, bias_t = prepare_conv_transpose_subpixel(tw, tb, stride=2)
    got = conv_transpose_subpixel_prepped(tx, wm_t, bias_t, c_out=2, stride=2)
    ref = _conv_transpose_ref(tx, tw, tb, stride=2, padding=1)
    err = float(jnp.max(jnp.abs(got - ref)))
    scale = float(jnp.max(jnp.abs(ref))) + 1e-6
    assert err <= 0.05 * scale + 0.02, (err, scale)

    # --- full FCN-8s forward ---
    # The 7x7 VALID fc6 on the /32 feature map requires at least a 224x224 input,
    # so (1, 3, 224, 224) is the smallest shape consistent with the module.
    x = jax.random.normal(jax.random.PRNGKey(0), (1, 3, 224, 224), dtype=jnp.float32)
    params = init_params(jax.random.PRNGKey(0), num_classes=num_classes)

    fwd = jax.jit(functools.partial(_fcn8s_forward, num_classes=num_classes))
    out = jax.block_until_ready(fwd(params, x))

    assert out.shape == (1, num_classes, 224, 224), out.shape
    assert out.dtype == jnp.float32
    assert bool(jnp.all(jnp.isfinite(out)))
    print("KERNEL_OK")
</pallas_src>

<mosaic_0001>
module attributes {stable_mosaic.version = 11 : i64} {
  func.func @_conv3x3_kernel(%arg0: i32, %arg1: memref<288x16xbf16, #tpu.memory_space<vmem>>, %arg2: memref<48x8xbf16, #tpu.memory_space<vmem>>, %arg3: memref<1x8xf32, #tpu.memory_space<vmem>>, %arg4: memref<256x8xf32, #tpu.memory_space<vmem>>) attributes {dimension_semantics = [#tpu.dimension_semantics<parallel>], iteration_bounds = array<i64: 1>, scalar_prefetch = 0 : i64, scratch_operands = 0 : i64, tpu.core_type = #tpu.core_type<tc>, window_params = [{pipeline_mode = #tpu.pipeline_mode<synchronous>, transform_indices = @transform_0, window_bounds = array<i64: 288, 16>}, {pipeline_mode = #tpu.pipeline_mode<synchronous>, transform_indices = @transform_1, window_bounds = array<i64: 48, 8>}, {pipeline_mode = #tpu.pipeline_mode<synchronous>, transform_indices = @transform_2, window_bounds = array<i64: 1, 8>}, {transform_indices = @transform_3, window_bounds = array<i64: 256, 8>}]} {
    %c256_i32 = arith.constant 256 : i32
    %0 = arith.muli %arg0, %c256_i32 : i32
    %1 = tpu.assume_multiple %0, 256 : i32
    %2 = arith.index_cast %1 : i32 to index
    %c0 = arith.constant 0 : index
    %3 = vector.load %arg1[%2, %c0] : memref<288x16xbf16, #tpu.memory_space<vmem>>, vector<256x16xbf16>
    %c0_0 = arith.constant 0 : index
    %c0_1 = arith.constant 0 : index
    %4 = vector.load %arg2[%c0_0, %c0_1] : memref<48x8xbf16, #tpu.memory_space<vmem>>, vector<16x8xbf16>
    %cst = arith.constant dense<0.000000e+00> : vector<256x8xf32>
    %5 = tpu.matmul %3, %4, %cst {dimension_numbers = #tpu.dot_dimension_numbers<[1], [0], [0], [1], [0, 0, 1, 1], [], []>} : vector<256x16xbf16>, vector<16x8xbf16>, vector<256x8xf32> -> vector<256x8xf32>
    %c16_i32 = arith.constant 16 : i32
    %6 = arith.addi %1, %c16_i32 : i32
    %7 = arith.index_cast %6 : i32 to index
    %c0_2 = arith.constant 0 : index
    %8 = vector.load %arg1[%7, %c0_2] : memref<288x16xbf16, #tpu.memory_space<vmem>>, vector<256x16xbf16>
    %c16 = arith.constant 16 : index
    %c0_3 = arith.constant 0 : index
    %9 = vector.load %arg2[%c16, %c0_3] : memref<48x8xbf16, #tpu.memory_space<vmem>>, vector<16x8xbf16>
    %cst_4 = arith.constant dense<0.000000e+00> : vector<256x8xf32>
    %10 = tpu.matmul %8, %9, %cst_4 {dimension_numbers = #tpu.dot_dimension_numbers<[1], [0], [0], [1], [0, 0, 1, 1], [], []>} : vector<256x16xbf16>, vector<16x8xbf16>, vector<256x8xf32> -> vector<256x8xf32>
    %11 = arith.addf %5, %10 : vector<256x8xf32>
    %c32_i32 = arith.constant 32 : i32
    %12 = arith.addi %1, %c32_i32 : i32
    %13 = arith.index_cast %12 : i32 to index
    %c0_5 = arith.constant 0 : index
    %14 = vector.load %arg1[%13, %c0_5] : memref<288x16xbf16, #tpu.memory_space<vmem>>, vector<256x16xbf16>
    %c32 = arith.constant 32 : index
    %c0_6 = arith.constant 0 : index
    %15 = vector.load %arg2[%c32, %c0_6] : memref<48x8xbf16, #tpu.memory_space<vmem>>, vector<16x8xbf16>
    %cst_7 = arith.constant dense<0.000000e+00> : vector<256x8xf32>
    %16 = tpu.matmul %14, %15, %cst_7 {dimension_numbers = #tpu.dot_dimension_numbers<[1], [0], [0], [1], [0, 0, 1, 1], [], []>} : vector<256x16xbf16>, vector<16x8xbf16>, vector<256x8xf32> -> vector<256x8xf32>
    %17 = arith.addf %11, %16 : vector<256x8xf32>
    %c0_8 = arith.constant 0 : index
    %c0_9 = arith.constant 0 : index
    %18 = vector.load %arg3[%c0_8, %c0_9] : memref<1x8xf32, #tpu.memory_space<vmem>>, vector<1x8xf32>
    %19 = vector.broadcast %18 : vector<1x8xf32> to vector<256x8xf32>
    %20 = arith.addf %17, %19 : vector<256x8xf32>
    %c0_10 = arith.constant 0 : index
    %c0_11 = arith.constant 0 : index
    %21 = vector.load %arg4[%c0_10, %c0_11] : memref<256x8xf32, #tpu.memory_space<vmem>>, vector<256x8xf32>
    tpu.vector_store %arg4[%c0_10, %c0_11], %20 {strides = array<i32>} : memref<256x8xf32, #tpu.memory_space<vmem>>, vector<256x8xf32>,
    return
  }
  func.func @transform_0(%arg0: i32) -> (i32, i32) {
    %c0_i32 = arith.constant 0 : i32
    %c0_i32_0 = arith.constant 0 : i32
    %c0_i32_1 = arith.constant 0 : i32
    return %c0_i32, %c0_i32_0 : i32, i32
  }
  func.func @transform_1(%arg0: i32) -> (i32, i32) {
    %c0_i32 = arith.constant 0 : i32
    %c0_i32_0 = arith.constant 0 : i32
    %c0_i32_1 = arith.constant 0 : i32
    return %c0_i32, %c0_i32_0 : i32, i32
  }
  func.func @transform_2(%arg0: i32) -> (i32, i32) {
    %c0_i32 = arith.constant 0 : i32
    %c0_i32_0 = arith.constant 0 : i32
    %c0_i32_1 = arith.constant 0 : i32
    return %c0_i32, %c0_i32_0 : i32, i32
  }
  func.func @transform_3(%arg0: i32) -> (i32, i32) {
    %c0_i32 = arith.constant 0 : i32
    %c0_i32_0 = arith.constant 0 : i32
    return %arg0, %c0_i32 : i32, i32
  }
}

</mosaic_0001>

<llo_original>
// kernel: tpu_custom_call.1
$region0: #{tpu_custom_call.1}
  #allocation0 [shape = 'u32[]', space=smem, size = 0x4, offset = 0x4, fixed_abs, tag = 'smem constant byte address 0x4 - core index']
  #allocation1 [shape = 'u32[144,128]{1,0:T(1,128)}', space=vmem, size = 0x12000, scoped, tag = 'internal scratch']
  %s0 = inlined_call_operand.vmem [shape: bf16[288,16], index: 0, kind: input, shape index: {}]
  %s1 = inlined_call_operand.vmem [shape: bf16[48,8], index: 1, kind: input, shape index: {}]
  %s2 = inlined_call_operand.vmem [shape: f32[1,8], index: 2, kind: input, shape index: {}]
  %s3 = inlined_call_operand.vmem [shape: f32[256,8], index: 3, kind: output, shape index: {}]
  %s4 = sld [smem:[#allocation0]]
  $region22: #{tpu_custom_call.1} parent=0
    _
  %s6 = ssub.s32 1, %s4
  %s7 = scalar_select 0, %s6, %s4
  // Predicated region
  $region2: #{tpu_custom_call.1} parent=0 // pred_check
    _
  $region3: #{tpu_custom_call.1} parent=0 // pred_check_branch
    %9 = sbr.rel (0) target = $region5
  $region4: #{tpu_custom_call.1} parent=0 // pred_region
    _
  $region5: #{tpu_custom_call.1} parent=0 // pred_fallthru
    _
  // Predicated region
  $region6: #{tpu_custom_call.1} parent=0 // pred_check
    _
  $region7: #{tpu_custom_call.1} parent=0 // pred_check_branch
    %11 = sbr.rel (0) target = $region9
  $region8: #{tpu_custom_call.1} parent=0 // pred_region
    _
  $region9: #{tpu_custom_call.1} parent=0 // pred_fallthru
    _
  // Predicated region
  $region10: #{tpu_custom_call.1} parent=0 // pred_check
    _
  $region11: #{tpu_custom_call.1} parent=0 // pred_check_branch
    %13 = sbr.rel (0) target = $region13
  $region12: #{tpu_custom_call.1} parent=0 // pred_region
    _
  $region13: #{tpu_custom_call.1} parent=0 // pred_fallthru
    _
  %s15 = smul.u32 0, 256
  %s16 = sshra.s32 %s15, 3
  %s17 = sand.u32 %s15, 7
  %s18 = smul.addr %s16, 4
  %s19 = scalar_lea.vmem %s0, %s18
  %v20 = vld [vmem:[%s19] sm:$0xf]
  %v21 = vld [vmem:[%s19 + $0x4] sm:$0xf]
  %v22 = vld [vmem:[%s19 + $0x8] sm:$0xf]
  %v23 = vld [vmem:[%s19 + $0xc] sm:$0xf]
  %v24 = vld [vmem:[%s19 + $0x10] sm:$0xf]
  %v25 = vld [vmem:[%s19 + $0x14] sm:$0xf]
  %v26 = vld [vmem:[%s19 + $0x18] sm:$0xf]
  %v27 = vld [vmem:[%s19 + $0x1c] sm:$0xf]
  %v28 = vld [vmem:[%s19 + $0x20] sm:$0xf]
  %v29 = vld [vmem:[%s19 + $0x24] sm:$0xf]
  %v30 = vld [vmem:[%s19 + $0x28] sm:$0xf]
  %v31 = vld [vmem:[%s19 + $0x2c] sm:$0xf]
  %v32 = vld [vmem:[%s19 + $0x30] sm:$0xf]
  %v33 = vld [vmem:[%s19 + $0x34] sm:$0xf]
  %v34 = vld [vmem:[%s19 + $0x38] sm:$0xf]
  %v35 = vld [vmem:[%s19 + $0x3c] sm:$0xf]
  %v36 = vld [vmem:[%s19 + $0x40] sm:$0xf]
  %v37 = vld [vmem:[%s19 + $0x44] sm:$0xf]
  %v38 = vld [vmem:[%s19 + $0x48] sm:$0xf]
  %v39 = vld [vmem:[%s19 + $0x4c] sm:$0xf]
  %v40 = vld [vmem:[%s19 + $0x50] sm:$0xf]
  %v41 = vld [vmem:[%s19 + $0x54] sm:$0xf]
  %v42 = vld [vmem:[%s19 + $0x58] sm:$0xf]
  %v43 = vld [vmem:[%s19 + $0x5c] sm:$0xf]
  %v44 = vld [vmem:[%s19 + $0x60] sm:$0xf]
  %v45 = vld [vmem:[%s19 + $0x64] sm:$0xf]
  %v46 = vld [vmem:[%s19 + $0x68] sm:$0xf]
  %v47 = vld [vmem:[%s19 + $0x6c] sm:$0xf]
  %v48 = vld [vmem:[%s19 + $0x70] sm:$0xf]
  %v49 = vld [vmem:[%s19 + $0x74] sm:$0xf]
  %v50 = vld [vmem:[%s19 + $0x78] sm:$0xf]
  %v51 = vld [vmem:[%s19 + $0x7c] sm:$0xf]
  %v52 = vld [vmem:[%s1] sm:$0xf]
  %v53 = vld [vmem:[%s1 + $0x4] sm:$0xf]
  %s54 = sadd.s32 %s15, 16
  %s55 = sshra.s32 %s54, 3
  %s56 = sand.u32 %s54, 7
  %s57 = smul.addr %s55, 4
  %s58 = scalar_lea.vmem %s0, %s57
  %v59 = vld [vmem:[%s58] sm:$0xf]
  %v60 = vld [vmem:[%s58 + $0x4] sm:$0xf]
  %v61 = vld [vmem:[%s58 + $0x8] sm:$0xf]
  %v62 = vld [vmem:[%s58 + $0xc] sm:$0xf]
  %v63 = vld [vmem:[%s58 + $0x10] sm:$0xf]
  %v64 = vld [vmem:[%s58 + $0x14] sm:$0xf]
  %v65 = vld [vmem:[%s58 + $0x18] sm:$0xf]
  %v66 = vld [vmem:[%s58 + $0x1c] sm:$0xf]
  %v67 = vld [vmem:[%s58 + $0x20] sm:$0xf]
  %v68 = vld [vmem:[%s58 + $0x24] sm:$0xf]
  %v69 = vld [vmem:[%s58 + $0x28] sm:$0xf]
  %v70 = vld [vmem:[%s58 + $0x2c] sm:$0xf]
  %v71 = vld [vmem:[%s58 + $0x30] sm:$0xf]
  %v72 = vld [vmem:[%s58 + $0x34] sm:$0xf]
  %v73 = vld [vmem:[%s58 + $0x38] sm:$0xf]
  %v74 = vld [vmem:[%s58 + $0x3c] sm:$0xf]
  %v75 = vld [vmem:[%s58 + $0x40] sm:$0xf]
  %v76 = vld [vmem:[%s58 + $0x44] sm:$0xf]
  %v77 = vld [vmem:[%s58 + $0x48] sm:$0xf]
  %v78 = vld [vmem:[%s58 + $0x4c] sm:$0xf]
  %v79 = vld [vmem:[%s58 + $0x50] sm:$0xf]
  %v80 = vld [vmem:[%s58 + $0x54] sm:$0xf]
  %v81 = vld [vmem:[%s58 + $0x58] sm:$0xf]
  %v82 = vld [vmem:[%s58 + $0x5c] sm:$0xf]
  %v83 = vld [vmem:[%s58 + $0x60] sm:$0xf]
  %v84 = vld [vmem:[%s58 + $0x64] sm:$0xf]
  %v85 = vld [vmem:[%s58 + $0x68] sm:$0xf]
  %v86 = vld [vmem:[%s58 + $0x6c] sm:$0xf]
  %v87 = vld [vmem:[%s58 + $0x70] sm:$0xf]
  %v88 = vld [vmem:[%s58 + $0x74] sm:$0xf]
  %v89 = vld [vmem:[%s58 + $0x78] sm:$0xf]
  %v90 = vld [vmem:[%s58 + $0x7c] sm:$0xf]
  %v91 = vld [vmem:[%s1 + $0x8] sm:$0xf]
  %v92 = vld [vmem:[%s1 + $0xc] sm:$0xf]
  %v125 = vunpack.c.l.b16 %v59
  %v126 = vunpack.c.l.b16 %v60
  %v127 = vunpack.c.l.b16 %v61
  %v128 = vunpack.c.l.b16 %v62
  %v129 = vunpack.c.l.b16 %v63
  %v130 = vunpack.c.l.b16 %v64
  %v131 = vunpack.c.l.b16 %v65
  %v132 = vunpack.c.l.b16 %v66
  %v133 = vunpack.c.l.b16 %v67
  %v134 = vunpack.c.l.b16 %v68
  %v135 = vunpack.c.l.b16 %v69
  %v136 = vunpack.c.l.b16 %v70
  %v137 = vunpack.c.l.b16 %v71
  %v138 = vunpack.c.l.b16 %v72
  %v139 = vunpack.c.l.b16 %v73
  %v140 = vunpack.c.l.b16 %v74
  %v141 = vunpack.c.l.b16 %v75
  %v142 = vunpack.c.l.b16 %v76
  %v143 = vunpack.c.l.b16 %v77
  %v144 = vunpack.c.l.b16 %v78
  %v145 = vunpack.c.l.b16 %v79
  %v146 = vunpack.c.l.b16 %v80
  %v147 = vunpack.c.l.b16 %v81
  %v148 = vunpack.c.l.b16 %v82
  %v149 = vunpack.c.l.b16 %v83
  %v150 = vunpack.c.l.b16 %v84
  %v151 = vunpack.c.l.b16 %v85
  %v152 = vunpack.c.l.b16 %v86
  %v153 = vunpack.c.l.b16 %v87
  %v154 = vunpack.c.l.b16 %v88
  %v155 = vunpack.c.l.b16 %v89
  %v156 = vunpack.c.l.b16 %v90
  %v157 = vpack.c.b16 %v126, %v125
  %v158 = vpack.c.b16 %v128, %v127
  %v159 = vpack.c.b16 %v130, %v129
  %v160 = vpack.c.b16 %v132, %v131
  %v161 = vpack.c.b16 %v134, %v133
  %v162 = vpack.c.b16 %v136, %v135
  %v163 = vpack.c.b16 %v138, %v137
  %v164 = vpack.c.b16 %v140, %v139
  %v165 = vpack.c.b16 %v142, %v141
  %v166 = vpack.c.b16 %v144, %v143
  %v167 = vpack.c.b16 %v146, %v145
  %v168 = vpack.c.b16 %v148, %v147
  %v169 = vpack.c.b16 %v150, %v149
  %v170 = vpack.c.b16 %v152, %v151
  %v171 = vpack.c.b16 %v154, %v153
  %v172 = vpack.c.b16 %v156, %v155
  %v175 = vunpack.c.l.b16 %v91
  %v176 = vunpack.c.l.b16 %v92
  %v177 = vpack.c.b16 %v176, %v175
  %vm179 = vcmask 130048
  %v181 = vsel %vm179, %v157, 0
  %v184 = vsel %vm179, %v158, 0
  %v187 = vsel %vm179, %v159, 0
  %v190 = vsel %vm179, %v160, 0
  %v193 = vsel %vm179, %v161, 0
  %v196 = vsel %vm179, %v162, 0
  %v199 = vsel %vm179, %v163, 0
  %v202 = vsel %vm179, %v164, 0
  %v205 = vsel %vm179, %v165, 0
  %v208 = vsel %vm179, %v166, 0
  %v211 = vsel %vm179, %v167, 0
  %v214 = vsel %vm179, %v168, 0
  %v217 = vsel %vm179, %v169, 0
  %v220 = vsel %vm179, %v170, 0
  %v223 = vsel %vm179, %v171, 0
  %v226 = vsel %vm179, %v172, 0
  %228 = vmatprep.subr.bf16.mxu0 0
  %229 = vmatpush1.bf16.msra.mxu0 %v177
  %230 = vmatprep.subr.bf16.mxu0 0
  %231 = vmatpush1.bf16.msra.mxu0 0
  %232 = vmatprep.subr.bf16.mxu0 0
  %233 = vmatpush1.bf16.msra.mxu0 0
  %234 = vmatprep.subr.bf16.mxu0 0
  %235 = vmatpush1.bf16.msra.mxu0 0
  %236 = vmatprep.subr.bf16.mxu0 0
  %237 = vmatpush1.bf16.msra.mxu0 0
  %238 = vmatprep.subr.bf16.mxu0 0
  %239 = vmatpush1.bf16.msra.mxu0 0
  %240 = vmatprep.subr.bf16.mxu0 0
  %241 = vmatpush1.bf16.msra.mxu0 0
  %242 = vmatprep.subr.bf16.mxu0 0
  %243 = vmatpush1.bf16.msra.mxu0 0
  %244 = vmatprep.subr.bf16.mxu0 0
  %245 = vmatpush1.bf16.msra.mxu0 0
  %246 = vmatprep.subr.bf16.mxu0 0
  %247 = vmatpush1.bf16.msra.mxu0 0
  %248 = vmatprep.subr.bf16.mxu0 0
  %249 = vmatpush1.bf16.msra.mxu0 0
  %250 = vmatprep.subr.bf16.mxu0 0
  %251 = vmatpush1.bf16.msra.mxu0 0
  %252 = vmatprep.subr.bf16.mxu0 0
  %253 = vmatpush1.bf16.msra.mxu0 0
  %254 = vmatprep.subr.bf16.mxu0 0
  %255 = vmatpush1.bf16.msra.mxu0 0
  %256 = vmatprep.subr.bf16.mxu0 0
  %257 = vmatpush1.bf16.msra.mxu0 0
  %258 = vmatprep.subr.bf16.mxu0 0
  %259 = vmatpush1.bf16.msra.mxu0 0
  %260 = vmatprep.mubr.bf16.mxu0 0
  %261 = vmatmul.mubr.bf16.gmra.mrb[0].mxu0 %v181
  %v262 = vpop.f32.mrb[0].mxu0
  %v263 = vadd.f32 0.0, %v262
  %v264 = vpop.f32.mrb[0].mxu0
  %v265 = vpop.f32.mrb[0].mxu0
  %v266 = vadd.f32 0.0, %v265
  %v267 = vpop.f32.mrb[0].mxu0
  %268 = vmatprep.mubr.bf16.mxu0 0
  %269 = vmatmul.mubr.bf16.gmra.mrb[0].mxu0 %v184
  %v270 = vpop.f32.mrb[0].mxu0
  %v271 = vadd.f32 0.0, %v270
  %v272 = vpop.f32.mrb[0].mxu0
  %v273 = vpop.f32.mrb[0].mxu0
  %v274 = vadd.f32 0.0, %v273
  %v275 = vpop.f32.mrb[0].mxu0
  %276 = vmatprep.mubr.bf16.mxu0 0
  %277 = vmatmul.mubr.bf16.gmra.mrb[0].mxu0 %v187
  %v278 = vpop.f32.mrb[0].mxu0
  %v279 = vadd.f32 0.0, %v278
  %v280 = vpop.f32.mrb[0].mxu0
  %v281 = vpop.f32.mrb[0].mxu0
  %v282 = vadd.f32 0.0, %v281
  %v283 = vpop.f32.mrb[0].mxu0
  %284 = vmatprep.mubr.bf16.mxu0 0
  %285 = vmatmul.mubr.bf16.gmra.mrb[0].mxu0 %v190
  %v286 = vpop.f32.mrb[0].mxu0
  %v287 = vadd.f32 0.0, %v286
  %v288 = vpop.f32.mrb[0].mxu0
  %v289 = vpop.f32.mrb[0].mxu0
  %v290 = vadd.f32 0.0, %v289
  %v291 = vpop.f32.mrb[0].mxu0
  %292 = vmatprep.mubr.bf16.mxu0 0
  %293 = vmatmul.mubr.bf16.gmra.mrb[0].mxu0 %v193
  %v294 = vpop.f32.mrb[0].mxu0
  %v295 = vadd.f32 0.0, %v294
  %v296 = vpop.f32.mrb[0].mxu0
  %v297 = vpop.f32.mrb[0].mxu0
  %v298 = vadd.f32 0.0, %v297
  %v299 = vpop.f32.mrb[0].mxu0
  %300 = vmatprep.mubr.bf16.mxu0 0
  %301 = vmatmul.mubr.bf16.gmra.mrb[0].mxu0 %v196
  %v302 = vpop.f32.mrb[0].mxu0
  %v303 = vadd.f32 0.0, %v302
  %v304 = vpop.f32.mrb[0].mxu0
  %v305 = vpop.f32.mrb[0].mxu0
  %v306 = vadd.f32 0.0, %v305
  %v307 = vpop.f32.mrb[0].mxu0
  %308 = vmatprep.mubr.bf16.mxu0 0
  %309 = vmatmul.mubr.bf16.gmra.mrb[0].mxu0 %v199
  %v310 = vpop.f32.mrb[0].mxu0
  %v311 = vadd.f32 0.0, %v310
  %v312 = vpop.f32.mrb[0].mxu0
  %v313 = vpop.f32.mrb[0].mxu0
  %v314 = vadd.f32 0.0, %v313
  %v315 = vpop.f32.mrb[0].mxu0
  %316 = vmatprep.mubr.bf16.mxu0 0
  %317 = vmatmul.mubr.bf16.gmra.mrb[0].mxu0 %v202
  %v318 = vpop.f32.mrb[0].mxu0
  %v319 = vadd.f32 0.0, %v318
  %v320 = vpop.f32.mrb[0].mxu0
  %v321 = vpop.f32.mrb[0].mxu0
  %v322 = vadd.f32 0.0, %v321
  %v323 = vpop.f32.mrb[0].mxu0
  %324 = vmatprep.mubr.bf16.mxu0 0
  %325 = vmatmul.mubr.bf16.gmra.mrb[0].mxu0 %v205
  %v326 = vpop.f32.mrb[0].mxu0
  %v327 = vadd.f32 0.0, %v326
  %v328 = vpop.f32.mrb[0].mxu0
  %v329 = vpop.f32.mrb[0].mxu0
  %v330 = vadd.f32 0.0, %v329
  %v331 = vpop.f32.mrb[0].mxu0
  %332 = vmatprep.mubr.bf16.mxu0 0
  %333 = vmatmul.mubr.bf16.gmra.mrb[0].mxu0 %v208
  %v334 = vpop.f32.mrb[0].mxu0
  %v335 = vadd.f32 0.0, %v334
  %v336 = vpop.f32.mrb[0].mxu0
  %v337 = vpop.f32.mrb[0].mxu0
  %v338 = vadd.f32 0.0, %v337
  %v339 = vpop.f32.mrb[0].mxu0
  %340 = vmatprep.mubr.bf16.mxu0 0
  %341 = vmatmul.mubr.bf16.gmra.mrb[0].mxu0 %v211
  %v342 = vpop.f32.mrb[0].mxu0
  %v343 = vadd.f32 0.0, %v342
  %v344 = vpop.f32.mrb[0].mxu0
  %v345 = vpop.f32.mrb[0].mxu0
  %v346 = vadd.f32 0.0, %v345
  %v347 = vpop.f32.mrb[0].mxu0
  %348 = vmatprep.mubr.bf16.mxu0 0
  %349 = vmatmul.mubr.bf16.gmra.mrb[0].mxu0 %v214
  %v350 = vpop.f32.mrb[0].mxu0
  %v351 = vadd.f32 0.0, %v350
  %v352 = vpop.f32.mrb[0].mxu0
  %v353 = vpop.f32.mrb[0].mxu0
  %v354 = vadd.f32 0.0, %v353
  %v355 = vpop.f32.mrb[0].mxu0
  %356 = vmatprep.mubr.bf16.mxu0 0
  %357 = vmatmul.mubr.bf16.gmra.mrb[0].mxu0 %v217
  %v358 = vpop.f32.mrb[0].mxu0
  %v359 = vadd.f32 0.0, %v358
  %v360 = vpop.f32.mrb[0].mxu0
  %v361 = vpop.f32.mrb[0].mxu0
  %v362 = vadd.f32 0.0, %v361
  %v363 = vpop.f32.mrb[0].mxu0
  %364 = vmatprep.mubr.bf16.mxu0 0
  %365 = vmatmul.mubr.bf16.gmra.mrb[0].mxu0 %v220
  %v366 = vpop.f32.mrb[0].mxu0
  %v367 = vadd.f32 0.0, %v366
  %v368 = vpop.f32.mrb[0].mxu0
  %v369 = vpop.f32.mrb[0].mxu0
  %v370 = vadd.f32 0.0, %v369
  %v371 = vpop.f32.mrb[0].mxu0
  %372 = vmatprep.mubr.bf16.mxu0 0
  %373 = vmatmul.mubr.bf16.gmra.mrb[0].mxu0 %v223
  %v374 = vpop.f32.mrb[0].mxu0
  %v375 = vadd.f32 0.0, %v374
  %v376 = vpop.f32.mrb[0].mxu0
  %v377 = vpop.f32.mrb[0].mxu0
  %v378 = vadd.f32 0.0, %v377
  %v379 = vpop.f32.mrb[0].mxu0
  %380 = vmatprep.mubr.bf16.mxu0 0
  %381 = vmatmul.mubr.bf16.gmra.mrb[0].mxu0 %v226
  %v382 = vpop.f32.mrb[0].mxu0
  %v383 = vadd.f32 0.0, %v382
  %v384 = vpop.f32.mrb[0].mxu0
  %v385 = vpop.f32.mrb[0].mxu0
  %v386 = vadd.f32 0.0, %v385
  %v387 = vpop.f32.mrb[0].mxu0
  %388 = vdwg.mxu0
  %v421 = vunpack.c.l.b16 %v20
  %v422 = vunpack.c.l.b16 %v21
  %v423 = vunpack.c.l.b16 %v22
  %v424 = vunpack.c.l.b16 %v23
  %v425 = vunpack.c.l.b16 %v24
  %v426 = vunpack.c.l.b16 %v25
  %v427 = vunpack.c.l.b16 %v26
  %v428 = vunpack.c.l.b16 %v27
  %v429 = vunpack.c.l.b16 %v28
  %v430 = vunpack.c.l.b16 %v29
  %v431 = vunpack.c.l.b16 %v30
  %v432 = vunpack.c.l.b16 %v31
  %v433 = vunpack.c.l.b16 %v32
  %v434 = vunpack.c.l.b16 %v33
  %v435 = vunpack.c.l.b16 %v34
  %v436 = vunpack.c.l.b16 %v35
  %v437 = vunpack.c.l.b16 %v36
  %v438 = vunpack.c.l.b16 %v37
  %v439 = vunpack.c.l.b16 %v38
  %v440 = vunpack.c.l.b16 %v39
  %v441 = vunpack.c.l.b16 %v40
  %v442 = vunpack.c.l.b16 %v41
  %v443 = vunpack.c.l.b16 %v42
  %v444 = vunpack.c.l.b16 %v43
  %v445 = vunpack.c.l.b16 %v44
  %v446 = vunpack.c.l.b16 %v45
  %v447 = vunpack.c.l.b16 %v46
  %v448 = vunpack.c.l.b16 %v47
  %v449 = vunpack.c.l.b16 %v48
  %v450 = vunpack.c.l.b16 %v49
  %v451 = vunpack.c.l.b16 %v50
  %v452 = vunpack.c.l.b16 %v51
  %v453 = vpack.c.b16 %v422, %v421
  %v454 = vpack.c.b16 %v424, %v423
  %v455 = vpack.c.b16 %v426, %v425
  %v456 = vpack.c.b16 %v428, %v427
  %v457 = vpack.c.b16 %v430, %v429
  %v458 = vpack.c.b16 %v432, %v431
  %v459 = vpack.c.b16 %v434, %v433
  %v460 = vpack.c.b16 %v436, %v435
  %v461 = vpack.c.b16 %v438, %v437
  %v462 = vpack.c.b16 %v440, %v439
  %v463 = vpack.c.b16 %v442, %v441
  %v464 = vpack.c.b16 %v444, %v443
  %v465 = vpack.c.b16 %v446, %v445
  %v466 = vpack.c.b16 %v448, %v447
  %v467 = vpack.c.b16 %v450, %v449
  %v468 = vpack.c.b16 %v452, %v451
  %v471 = vunpack.c.l.b16 %v52
  %v472 = vunpack.c.l.b16 %v53
  %v473 = vpack.c.b16 %v472, %v471
  %v476 = vsel %vm179, %v453, 0
  %v479 = vsel %vm179, %v454, 0
  %v482 = vsel %vm179, %v455, 0
  %v485 = vsel %vm179, %v456, 0
  %v488 = vsel %vm179, %v457, 0
  %v491 = vsel %vm179, %v458, 0
  %v494 = vsel %vm179, %v459, 0
  %v497 = vsel %vm179, %v460, 0
  %v500 = vsel %vm179, %v461, 0
  %v503 = vsel %vm179, %v462, 0
  %v506 = vsel %vm179, %v463, 0
  %v509 = vsel %vm179, %v464, 0
  %v512 = vsel %vm179, %v465, 0
  %v515 = vsel %vm179, %v466, 0
  %v518 = vsel %vm179, %v467, 0
  %v521 = vsel %vm179, %v468, 0
  %523 = vmatprep.subr.bf16.mxu0 0
  %524 = vmatpush1.bf16.msra.mxu0 %v473
  %525 = vmatprep.subr.bf16.mxu0 0
  %526 = vmatpush1.bf16.msra.mxu0 0
  %527 = vmatprep.subr.bf16.mxu0 0
  %528 = vmatpush1.bf16.msra.mxu0 0
  %529 = vmatprep.subr.bf16.mxu0 0
  %530 = vmatpush1.bf16.msra.mxu0 0
  %531 = vmatprep.subr.bf16.mxu0 0
  %532 = vmatpush1.bf16.msra.mxu0 0
  %533 = vmatprep.subr.bf16.mxu0 0
  %534 = vmatpush1.bf16.msra.mxu0 0
  %535 = vmatprep.subr.bf16.mxu0 0
  %536 = vmatpush1.bf16.msra.mxu0 0
  %537 = vmatprep.subr.bf16.mxu0 0
  %538 = vmatpush1.bf16.msra.mxu0 0
  %539 = vmatprep.subr.bf16.mxu0 0
  %540 = vmatpush1.bf16.msra.mxu0 0
  %541 = vmatprep.subr.bf16.mxu0 0
  %542 = vmatpush1.bf16.msra.mxu0 0
  %543 = vmatprep.subr.bf16.mxu0 0
  %544 = vmatpush1.bf16.msra.mxu0 0
  %545 = vmatprep.subr.bf16.mxu0 0
  %546 = vmatpush1.bf16.msra.mxu0 0
  %547 = vmatprep.subr.bf16.mxu0 0
  %548 = vmatpush1.bf16.msra.mxu0 0
  %549 = vmatprep.subr.bf16.mxu0 0
  %550 = vmatpush1.bf16.msra.mxu0 0
  %551 = vmatprep.subr.bf16.mxu0 0
  %552 = vmatpush1.bf16.msra.mxu0 0
  %553 = vmatprep.subr.bf16.mxu0 0
  %554 = vmatpush1.bf16.msra.mxu0 0
  %555 = vmatprep.mubr.bf16.mxu0 0
  %556 = vmatmul.mubr.bf16.gmra.mrb[0].mxu0 %v476
  %v557 = vpop.f32.mrb[0].mxu0
  %v558 = vadd.f32 %v263, %v557
  %v559 = vpop.f32.mrb[0].mxu0
  %v560 = vpop.f32.mrb[0].mxu0
  %v561 = vadd.f32 %v266, %v560
  %v562 = vpop.f32.mrb[0].mxu0
  %563 = vmatprep.mubr.bf16.mxu0 0
  %564 = vmatmul.mubr.bf16.gmra.mrb[0].mxu0 %v479
  %v565 = vpop.f32.mrb[0].mxu0
  %v566 = vadd.f32 %v271, %v565
  %v567 = vpop.f32.mrb[0].mxu0
  %v568 = vpop.f32.mrb[0].mxu0
  %v569 = vadd.f32 %v274, %v568
  %v570 = vpop.f32.mrb[0].mxu0
  %571 = vmatprep.mubr.bf16.mxu0 0
  %572 = vmatmul.mubr.bf16.gmra.mrb[0].mxu0 %v482
  %v573 = vpop.f32.mrb[0].mxu0
  %v574 = vadd.f32 %v279, %v573
  %v575 = vpop.f32.mrb[0].mxu0
  %v576 = vpop.f32.mrb[0].mxu0
  %v577 = vadd.f32 %v282, %v576
  %v578 = vpop.f32.mrb[0].mxu0
  %579 = vmatprep.mubr.bf16.mxu0 0
  %580 = vmatmul.mubr.bf16.gmra.mrb[0].mxu0 %v485
  %v581 = vpop.f32.mrb[0].mxu0
  %v582 = vadd.f32 %v287, %v581
  %v583 = vpop.f32.mrb[0].mxu0
  %v584 = vpop.f32.mrb[0].mxu0
  %v585 = vadd.f32 %v290, %v584
  %v586 = vpop.f32.mrb[0].mxu0
  %587 = vmatprep.mubr.bf16.mxu0 0
  %588 = vmatmul.mubr.bf16.gmra.mrb[0].mxu0 %v488
  %v589 = vpop.f32.mrb[0].mxu0
  %v590 = vadd.f32 %v295, %v589
  %v591 = vpop.f32.mrb[0].mxu0
  %v592 = vpop.f32.mrb[0].mxu0
  %v593 = vadd.f32 %v298, %v592
  %v594 = vpop.f32.mrb[0].mxu0
  %595 = vmatprep.mubr.bf16.mxu0 0
  %596 = vmatmul.mubr.bf16.gmra.mrb[0].mxu0 %v491
  %v597 = vpop.f32.mrb[0].mxu0
  %v598 = vadd.f32 %v303, %v597
  %v599 = vpop.f32.mrb[0].mxu0
  %v600 = vpop.f32.mrb[0].mxu0
  %v601 = vadd.f32 %v306, %v600
  %v602 = vpop.f32.mrb[0].mxu0
  %603 = vmatprep.mubr.bf16.mxu0 0
  %604 = vmatmul.mubr.bf16.gmra.mrb[0].mxu0 %v494
  %v605 = vpop.f32.mrb[0].mxu0
  %v606 = vadd.f32 %v311, %v605
  %v607 = vpop.f32.mrb[0].mxu0
  %v608 = vpop.f32.mrb[0].mxu0
  %v609 = vadd.f32 %v314, %v608
  %v610 = vpop.f32.mrb[0].mxu0
  %611 = vmatprep.mubr.bf16.mxu0 0
  %612 = vmatmul.mubr.bf16.gmra.mrb[0].mxu0 %v497
  %v613 = vpop.f32.mrb[0].mxu0
  %v614 = vadd.f32 %v319, %v613
  %v615 = vpop.f32.mrb[0].mxu0
  %v616 = vpop.f32.mrb[0].mxu0
  %v617 = vadd.f32 %v322, %v616
  %v618 = vpop.f32.mrb[0].mxu0
  %619 = vmatprep.mubr.bf16.mxu0 0
  %620 = vmatmul.mubr.bf16.gmra.mrb[0].mxu0 %v500
  %v621 = vpop.f32.mrb[0].mxu0
  %v622 = vadd.f32 %v327, %v621
  %v623 = vpop.f32.mrb[0].mxu0
  %v624 = vpop.f32.mrb[0].mxu0
  %v625 = vadd.f32 %v330, %v624
  %v626 = vpop.f32.mrb[0].mxu0
  %627 = vmatprep.mubr.bf16.mxu0 0
  %628 = vmatmul.mubr.bf16.gmra.mrb[0].mxu0 %v503
  %v629 = vpop.f32.mrb[0].mxu0
  %v630 = vadd.f32 %v335, %v629
  %v631 = vpop.f32.mrb[0].mxu0
  %v632 = vpop.f32.mrb[0].mxu0
  %v633 = vadd.f32 %v338, %v632
  %v634 = vpop.f32.mrb[0].mxu0
  %635 = vmatprep.mubr.bf16.mxu0 0
  %636 = vmatmul.mubr.bf16.gmra.mrb[0].mxu0 %v506
  %v637 = vpop.f32.mrb[0].mxu0
  %v638 = vadd.f32 %v343, %v637
  %v639 = vpop.f32.mrb[0].mxu0
  %v640 = vpop.f32.mrb[0].mxu0
  %v641 = vadd.f32 %v346, %v640
  %v642 = vpop.f32.mrb[0].mxu0
  %643 = vmatprep.mubr.bf16.mxu0 0
  %644 = vmatmul.mubr.bf16.gmra.mrb[0].mxu0 %v509
  %v645 = vpop.f32.mrb[0].mxu0
  %v646 = vadd.f32 %v351, %v645
  %v647 = vpop.f32.mrb[0].mxu0
  %v648 = vpop.f32.mrb[0].mxu0
  %v649 = vadd.f32 %v354, %v648
  %v650 = vpop.f32.mrb[0].mxu0
  %651 = vmatprep.mubr.bf16.mxu0 0
  %652 = vmatmul.mubr.bf16.gmra.mrb[0].mxu0 %v512
  %v653 = vpop.f32.mrb[0].mxu0
  %v654 = vadd.f32 %v359, %v653
  %v655 = vpop.f32.mrb[0].mxu0
  %v656 = vpop.f32.mrb[0].mxu0
  %v657 = vadd.f32 %v362, %v656
  %v658 = vpop.f32.mrb[0].mxu0
  %659 = vmatprep.mubr.bf16.mxu0 0
  %660 = vmatmul.mubr.bf16.gmra.mrb[0].mxu0 %v515
  %v661 = vpop.f32.mrb[0].mxu0
  %v662 = vadd.f32 %v367, %v661
  %v663 = vpop.f32.mrb[0].mxu0
  %v664 = vpop.f32.mrb[0].mxu0
  %v665 = vadd.f32 %v370, %v664
  %v666 = vpop.f32.mrb[0].mxu0
  %667 = vmatprep.mubr.bf16.mxu0 0
  %668 = vmatmul.mubr.bf16.gmra.mrb[0].mxu0 %v518
  %v669 = vpop.f32.mrb[0].mxu0
  %v670 = vadd.f32 %v375, %v669
  %v671 = vpop.f32.mrb[0].mxu0
  %v672 = vpop.f32.mrb[0].mxu0
  %v673 = vadd.f32 %v378, %v672
  %v674 = vpop.f32.mrb[0].mxu0
  %675 = vmatprep.mubr.bf16.mxu0 0
  %676 = vmatmul.mubr.bf16.gmra.mrb[0].mxu0 %v521
  %v677 = vpop.f32.mrb[0].mxu0
  %v678 = vadd.f32 %v383, %v677
  %v679 = vpop.f32.mrb[0].mxu0
  %v680 = vpop.f32.mrb[0].mxu0
  %v681 = vadd.f32 %v386, %v680
  %v682 = vpop.f32.mrb[0].mxu0
  %683 = vdwg.mxu0
  %s684 = sadd.s32 %s15, 32
  %s685 = sshra.s32 %s684, 3
  %s686 = sand.u32 %s684, 7
  %s687 = smul.addr %s685, 4
  %s688 = scalar_lea.vmem %s0, %s687
  %v689 = vld [vmem:[%s688] sm:$0xf]
  %v690 = vld [vmem:[%s688 + $0x4] sm:$0xf]
  %v691 = vld [vmem:[%s688 + $0x8] sm:$0xf]
  %v692 = vld [vmem:[%s688 + $0xc] sm:$0xf]
  %v693 = vld [vmem:[%s688 + $0x10] sm:$0xf]
  %v694 = vld [vmem:[%s688 + $0x14] sm:$0xf]
  %v695 = vld [vmem:[%s688 + $0x18] sm:$0xf]
  %v696 = vld [vmem:[%s688 + $0x1c] sm:$0xf]
  %v697 = vld [vmem:[%s688 + $0x20] sm:$0xf]
  %v698 = vld [vmem:[%s688 + $0x24] sm:$0xf]
  %v699 = vld [vmem:[%s688 + $0x28] sm:$0xf]
  %v700 = vld [vmem:[%s688 + $0x2c] sm:$0xf]
  %v701 = vld [vmem:[%s688 + $0x30] sm:$0xf]
  %v702 = vld [vmem:[%s688 + $0x34] sm:$0xf]
  %v703 = vld [vmem:[%s688 + $0x38] sm:$0xf]
  %v704 = vld [vmem:[%s688 + $0x3c] sm:$0xf]
  %v705 = vld [vmem:[%s688 + $0x40] sm:$0xf]
  %v706 = vld [vmem:[%s688 + $0x44] sm:$0xf]
  %v707 = vld [vmem:[%s688 + $0x48] sm:$0xf]
  %v708 = vld [vmem:[%s688 + $0x4c] sm:$0xf]
  %v709 = vld [vmem:[%s688 + $0x50] sm:$0xf]
  %v710 = vld [vmem:[%s688 + $0x54] sm:$0xf]
  %v711 = vld [vmem:[%s688 + $0x58] sm:$0xf]
  %v712 = vld [vmem:[%s688 + $0x5c] sm:$0xf]
  %v713 = vld [vmem:[%s688 + $0x60] sm:$0xf]
  %v714 = vld [vmem:[%s688 + $0x64] sm:$0xf]
  %v715 = vld [vmem:[%s688 + $0x68] sm:$0xf]
  %v716 = vld [vmem:[%s688 + $0x6c] sm:$0xf]
  %v717 = vld [vmem:[%s688 + $0x70] sm:$0xf]
  %v718 = vld [vmem:[%s688 + $0x74] sm:$0xf]
  %v719 = vld [vmem:[%s688 + $0x78] sm:$0xf]
  %v720 = vld [vmem:[%s688 + $0x7c] sm:$0xf]
  %v721 = vld [vmem:[%s1 + $0x10] sm:$0xf]
  %v722 = vld [vmem:[%s1 + $0x14] sm:$0xf]
  %v755 = vunpack.c.l.b16 %v689
  %v756 = vunpack.c.l.b16 %v690
  %v757 = vunpack.c.l.b16 %v691
  %v758 = vunpack.c.l.b16 %v692
  %v759 = vunpack.c.l.b16 %v693
  %v760 = vunpack.c.l.b16 %v694
  %v761 = vunpack.c.l.b16 %v695
  %v762 = vunpack.c.l.b16 %v696
  %v763 = vunpack.c.l.b16 %v697
  %v764 = vunpack.c.l.b16 %v698
  %v765 = vunpack.c.l.b16 %v699
  %v766 = vunpack.c.l.b16 %v700
  %v767 = vunpack.c.l.b16 %v701
  %v768 = vunpack.c.l.b16 %v702
  %v769 = vunpack.c.l.b16 %v703
  %v770 = vunpack.c.l.b16 %v704
  %v771 = vunpack.c.l.b16 %v705
  %v772 = vunpack.c.l.b16 %v706
  %v773 = vunpack.c.l.b16 %v707
  %v774 = vunpack.c.l.b16 %v708
  %v775 = vunpack.c.l.b16 %v709
  %v776 = vunpack.c.l.b16 %v710
  %v777 = vunpack.c.l.b16 %v711
  %v778 = vunpack.c.l.b16 %v712
  %v779 = vunpack.c.l.b16 %v713
  %v780 = vunpack.c.l.b16 %v714
  %v781 = vunpack.c.l.b16 %v715
  %v782 = vunpack.c.l.b16 %v716
  %v783 = vunpack.c.l.b16 %v717
  %v784 = vunpack.c.l.b16 %v718
  %v785 = vunpack.c.l.b16 %v719
  %v786 = vunpack.c.l.b16 %v720
  %v787 = vpack.c.b16 %v756, %v755
  %v788 = vpack.c.b16 %v758, %v757
  %v789 = vpack.c.b16 %v760, %v759
  %v790 = vpack.c.b16 %v762, %v761
  %v791 = vpack.c.b16 %v764, %v763
  %v792 = vpack.c.b16 %v766, %v765
  %v793 = vpack.c.b16 %v768, %v767
  %v794 = vpack.c.b16 %v770, %v769
  %v795 = vpack.c.b16 %v772, %v771
  %v796 = vpack.c.b16 %v774, %v773
  %v797 = vpack.c.b16 %v776, %v775
  %v798 = vpack.c.b16 %v778, %v777
  %v799 = vpack.c.b16 %v780, %v779
  %v800 = vpack.c.b16 %v782, %v781
  %v801 = vpack.c.b16 %v784, %v783
  %v802 = vpack.c.b16 %v786, %v785
  %v805 = vunpack.c.l.b16 %v721
  %v806 = vunpack.c.l.b16 %v722
  %v807 = vpack.c.b16 %v806, %v805
  %v810 = vsel %vm179, %v787, 0
  %v813 = vsel %vm179, %v788, 0
  %v816 = vsel %vm179, %v789, 0
  %v819 = vsel %vm179, %v790, 0
  %v822 = vsel %vm179, %v791, 0
  %v825 = vsel %vm179, %v792, 0
  %v828 = vsel %vm179, %v793, 0
  %v831 = vsel %vm179, %v794, 0
  %v834 = vsel %vm179, %v795, 0
  %v837 = vsel %vm179, %v796, 0
  %v840 = vsel %vm179, %v797, 0
  %v843 = vsel %vm179, %v798, 0
  %v846 = vsel %vm179, %v799, 0
  %v849 = vsel %vm179, %v800, 0
  %v852 = vsel %vm179, %v801, 0
  %v855 = vsel %vm179, %v802, 0
  %857 = vmatprep.subr.bf16.mxu0 0
  %858 = vmatpush1.bf16.msra.mxu0 %v807
  %859 = vmatprep.subr.bf16.mxu0 0
  %860 = vmatpush1.bf16.msra.mxu0 0
  %861 = vmatprep.subr.bf16.mxu0 0
  %862 = vmatpush1.bf16.msra.mxu0 0
  %863 = vmatprep.subr.bf16.mxu0 0
  %864 = vmatpush1.bf16.msra.mxu0 0
  %865 = vmatprep.subr.bf16.mxu0 0
  %866 = vmatpush1.bf16.msra.mxu0 0
  %867 = vmatprep.subr.bf16.mxu0 0
  %868 = vmatpush1.bf16.msra.mxu0 0
  %869 = vmatprep.subr.bf16.mxu0 0
  %870 = vmatpush1.bf16.msra.mxu0 0
  %871 = vmatprep.subr.bf16.mxu0 0
  %872 = vmatpush1.bf16.msra.mxu0 0
  %873 = vmatprep.subr.bf16.mxu0 0
  %874 = vmatpush1.bf16.msra.mxu0 0
  %875 = vmatprep.subr.bf16.mxu0 0
  %876 = vmatpush1.bf16.msra.mxu0 0
  %877 = vmatprep.subr.bf16.mxu0 0
  %878 = vmatpush1.bf16.msra.mxu0 0
  %879 = vmatprep.subr.bf16.mxu0 0
  %880 = vmatpush1.bf16.msra.mxu0 0
  %881 = vmatprep.subr.bf16.mxu0 0
  %882 = vmatpush1.bf16.msra.mxu0 0
  %883 = vmatprep.subr.bf16.mxu0 0
  %884 = vmatpush1.bf16.msra.mxu0 0
  %885 = vmatprep.subr.bf16.mxu0 0
  %886 = vmatpush1.bf16.msra.mxu0 0
  %887 = vmatprep.subr.bf16.mxu0 0
  %888 = vmatpush1.bf16.msra.mxu0 0
  %889 = vmatprep.mubr.bf16.mxu0 0
  %890 = vmatmul.mubr.bf16.gmra.mrb[0].mxu0 %v810
  %v891 = vpop.f32.mrb[0].mxu0
  %v892 = vadd.f32 0.0, %v891
  %v893 = vpop.f32.mrb[0].mxu0
  %v894 = vpop.f32.mrb[0].mxu0
  %v895 = vadd.f32 0.0, %v894
  %v896 = vpop.f32.mrb[0].mxu0
  %897 = vmatprep.mubr.bf16.mxu0 0
  %898 = vmatmul.mubr.bf16.gmra.mrb[0].mxu0 %v813
  %v899 = vpop.f32.mrb[0].mxu0
  %v900 = vadd.f32 0.0, %v899
  %v901 = vpop.f32.mrb[0].mxu0
  %v902 = vpop.f32.mrb[0].mxu0
  %v903 = vadd.f32 0.0, %v902
  %v904 = vpop.f32.mrb[0].mxu0
  %905 = vmatprep.mubr.bf16.mxu0 0
  %906 = vmatmul.mubr.bf16.gmra.mrb[0].mxu0 %v816
  %v907 = vpop.f32.mrb[0].mxu0
  %v908 = vadd.f32 0.0, %v907
  %v909 = vpop.f32.mrb[0].mxu0
  %v910 = vpop.f32.mrb[0].mxu0
  %v911 = vadd.f32 0.0, %v910
  %v912 = vpop.f32.mrb[0].mxu0
  %913 = vmatprep.mubr.bf16.mxu0 0
  %914 = vmatmul.mubr.bf16.gmra.mrb[0].mxu0 %v819
  %v915 = vpop.f32.mrb[0].mxu0
  %v916 = vadd.f32 0.0, %v915
  %v917 = vpop.f32.mrb[0].mxu0
  %v918 = vpop.f32.mrb[0].mxu0
  %v919 = vadd.f32 0.0, %v918
  %v920 = vpop.f32.mrb[0].mxu0
  %921 = vmatprep.mubr.bf16.mxu0 0
  %922 = vmatmul.mubr.bf16.gmra.mrb[0].mxu0 %v822
  %v923 = vpop.f32.mrb[0].mxu0
  %v924 = vadd.f32 0.0, %v923
  %v925 = vpop.f32.mrb[0].mxu0
  %v926 = vpop.f32.mrb[0].mxu0
  %v927 = vadd.f32 0.0, %v926
  %v928 = vpop.f32.mrb[0].mxu0
  %929 = vmatprep.mubr.bf16.mxu0 0
  %930 = vmatmul.mubr.bf16.gmra.mrb[0].mxu0 %v825
  %v931 = vpop.f32.mrb[0].mxu0
  %v932 = vadd.f32 0.0, %v931
  %v933 = vpop.f32.mrb[0].mxu0
  %v934 = vpop.f32.mrb[0].mxu0
  %v935 = vadd.f32 0.0, %v934
  %v936 = vpop.f32.mrb[0].mxu0
  %937 = vmatprep.mubr.bf16.mxu0 0
  %938 = vmatmul.mubr.bf16.gmra.mrb[0].mxu0 %v828
  %v939 = vpop.f32.mrb[0].mxu0
  %v940 = vadd.f32 0.0, %v939
  %v941 = vpop.f32.mrb[0].mxu0
  %v942 = vpop.f32.mrb[0].mxu0
  %v943 = vadd.f32 0.0, %v942
  %v944 = vpop.f32.mrb[0].mxu0
  %945 = vmatprep.mubr.bf16.mxu0 0
  %946 = vmatmul.mubr.bf16.gmra.mrb[0].mxu0 %v831
  %v947 = vpop.f32.mrb[0].mxu0
  %v948 = vadd.f32 0.0, %v947
  %v949 = vpop.f32.mrb[0].mxu0
  %v950 = vpop.f32.mrb[0].mxu0
  %v951 = vadd.f32 0.0, %v950
  %v952 = vpop.f32.mrb[0].mxu0
  %953 = vmatprep.mubr.bf16.mxu0 0
  %954 = vmatmul.mubr.bf16.gmra.mrb[0].mxu0 %v834
  %v955 = vpop.f32.mrb[0].mxu0
  %v956 = vadd.f32 0.0, %v955
  %v957 = vpop.f32.mrb[0].mxu0
  %v958 = vpop.f32.mrb[0].mxu0
  %v959 = vadd.f32 0.0, %v958
  %v960 = vpop.f32.mrb[0].mxu0
  %961 = vmatprep.mubr.bf16.mxu0 0
  %962 = vmatmul.mubr.bf16.gmra.mrb[0].mxu0 %v837
  %v963 = vpop.f32.mrb[0].mxu0
  %v964 = vadd.f32 0.0, %v963
  %v965 = vpop.f32.mrb[0].mxu0
  %v966 = vpop.f32.mrb[0].mxu0
  %v967 = vadd.f32 0.0, %v966
  %v968 = vpop.f32.mrb[0].mxu0
  %969 = vmatprep.mubr.bf16.mxu0 0
  %970 = vmatmul.mubr.bf16.gmra.mrb[0].mxu0 %v840
  %v971 = vpop.f32.mrb[0].mxu0
  %v972 = vadd.f32 0.0, %v971
  %v973 = vpop.f32.mrb[0].mxu0
  %v974 = vpop.f32.mrb[0].mxu0
  %v975 = vadd.f32 0.0, %v974
  %v976 = vpop.f32.mrb[0].mxu0
  %977 = vmatprep.mubr.bf16.mxu0 0
  %978 = vmatmul.mubr.bf16.gmra.mrb[0].mxu0 %v843
  %v979 = vpop.f32.mrb[0].mxu0
  %v980 = vadd.f32 0.0, %v979
  %v981 = vpop.f32.mrb[0].mxu0
  %v982 = vpop.f32.mrb[0].mxu0
  %v983 = vadd.f32 0.0, %v982
  %v984 = vpop.f32.mrb[0].mxu0
  %985 = vmatprep.mubr.bf16.mxu0 0
  %986 = vmatmul.mubr.bf16.gmra.mrb[0].mxu0 %v846
  %v987 = vpop.f32.mrb[0].mxu0
  %v988 = vadd.f32 0.0, %v987
  %v989 = vpop.f32.mrb[0].mxu0
  %v990 = vpop.f32.mrb[0].mxu0
  %v991 = vadd.f32 0.0, %v990
  %v992 = vpop.f32.mrb[0].mxu0
  %993 = vmatprep.mubr.bf16.mxu0 0
  %994 = vmatmul.mubr.bf16.gmra.mrb[0].mxu0 %v849
  %v995 = vpop.f32.mrb[0].mxu0
  %v996 = vadd.f32 0.0, %v995
  %v997 = vpop.f32.mrb[0].mxu0
  %v998 = vpop.f32.mrb[0].mxu0
  %v999 = vadd.f32 0.0, %v998
  %v1000 = vpop.f32.mrb[0].mxu0
  %1001 = vmatprep.mubr.bf16.mxu0 0
  %1002 = vmatmul.mubr.bf16.gmra.mrb[0].mxu0 %v852
  %v1003 = vpop.f32.mrb[0].mxu0
  %v1004 = vadd.f32 0.0, %v1003
  %v1005 = vpop.f32.mrb[0].mxu0
  %v1006 = vpop.f32.mrb[0].mxu0
  %v1007 = vadd.f32 0.0, %v1006
  %v1008 = vpop.f32.mrb[0].mxu0
  %1009 = vmatprep.mubr.bf16.mxu0 0
  %1010 = vmatmul.mubr.bf16.gmra.mrb[0].mxu0 %v855
  %v1011 = vpop.f32.mrb[0].mxu0
  %v1012 = vadd.f32 0.0, %v1011
  %v1013 = vpop.f32.mrb[0].mxu0
  %v1014 = vpop.f32.mrb[0].mxu0
  %v1015 = vadd.f32 0.0, %v1014
  %v1016 = vpop.f32.mrb[0].mxu0
  %1017 = vdwg.mxu0
  %v1018 = vadd.f32 %v558, %v892
  %v1019 = vadd.f32 %v561, %v895
  %v1020 = vadd.f32 %v566, %v900
  %v1021 = vadd.f32 %v569, %v903
  %v1022 = vadd.f32 %v574, %v908
  %v1023 = vadd.f32 %v577, %v911
  %v1024 = vadd.f32 %v582, %v916
  %v1025 = vadd.f32 %v585, %v919
  %v1026 = vadd.f32 %v590, %v924
  %v1027 = vadd.f32 %v593, %v927
  %v1028 = vadd.f32 %v598, %v932
  %v1029 = vadd.f32 %v601, %v935
  %v1030 = vadd.f32 %v606, %v940
  %v1031 = vadd.f32 %v609, %v943
  %v1032 = vadd.f32 %v614, %v948
  %v1033 = vadd.f32 %v617, %v951
  %v1034 = vadd.f32 %v622, %v956
  %v1035 = vadd.f32 %v625, %v959
  %v1036 = vadd.f32 %v630, %v964
  %v1037 = vadd.f32 %v633, %v967
  %v1038 = vadd.f32 %v638, %v972
  %v1039 = vadd.f32 %v641, %v975
  %v1040 = vadd.f32 %v646, %v980
  %v1041 = vadd.f32 %v649, %v983
  %v1042 = vadd.f32 %v654, %v988
  %v1043 = vadd.f32 %v657, %v991
  %v1044 = vadd.f32 %v662, %v996
  %v1045 = vadd.f32 %v665, %v999
  %v1046 = vadd.f32 %v670, %v1004
  %v1047 = vadd.f32 %v673, %v1007
  %v1048 = vadd.f32 %v678, %v1012
  %v1049 = vadd.f32 %v681, %v1015
  %v1050 = vld [vmem:[%s2] sm:$0x1]
  %v1052 = vlaneseq
  %v1053 = vshrl.u32 %v1052, 7
  %v1054 = vsub.s32 0, %v1053
  %v1055 = vrot.slane %v1050, %v1054
  %v1057 = vadd.f32 %v1018, %v1055
  %v1058 = vadd.f32 %v1019, %v1055
  %v1059 = vadd.f32 %v1020, %v1055
  %v1060 = vadd.f32 %v1021, %v1055
  %v1061 = vadd.f32 %v1022, %v1055
  %v1062 = vadd.f32 %v1023, %v1055
  %v1063 = vadd.f32 %v1024, %v1055
  %v1064 = vadd.f32 %v1025, %v1055
  %v1065 = vadd.f32 %v1026, %v1055
  %v1066 = vadd.f32 %v1027, %v1055
  %v1067 = vadd.f32 %v1028, %v1055
  %v1068 = vadd.f32 %v1029, %v1055
  %v1069 = vadd.f32 %v1030, %v1055
  %v1070 = vadd.f32 %v1031, %v1055
  %v1071 = vadd.f32 %v1032, %v1055
  %v1072 = vadd.f32 %v1033, %v1055
  %v1073 = vadd.f32 %v1034, %v1055
  %v1074 = vadd.f32 %v1035, %v1055
  %v1075 = vadd.f32 %v1036, %v1055
  %v1076 = vadd.f32 %v1037, %v1055
  %v1077 = vadd.f32 %v1038, %v1055
  %v1078 = vadd.f32 %v1039, %v1055
  %v1079 = vadd.f32 %v1040, %v1055
  %v1080 = vadd.f32 %v1041, %v1055
  %v1081 = vadd.f32 %v1042, %v1055
  %v1082 = vadd.f32 %v1043, %v1055
  %v1083 = vadd.f32 %v1044, %v1055
  %v1084 = vadd.f32 %v1045, %v1055
  %v1085 = vadd.f32 %v1046, %v1055
  %v1086 = vadd.f32 %v1047, %v1055
  %v1087 = vadd.f32 %v1048, %v1055
  %v1088 = vadd.f32 %v1049, %v1055
  %vm1089 = vcmask 64512
  %1090 = vst.msk [vmem:[%s3] sm:$0xff] %vm1089, %v1057
  %1091 = vst.msk [vmem:[%s3 + $0x8] sm:$0xff] %vm1089, %v1058
  %1092 = vst.msk [vmem:[%s3 + $0x10] sm:$0xff] %vm1089, %v1059
  %1093 = vst.msk [vmem:[%s3 + $0x18] sm:$0xff] %vm1089, %v1060
  %1094 = vst.msk [vmem:[%s3 + $0x20] sm:$0xff] %vm1089, %v1061
  %1095 = vst.msk [vmem:[%s3 + $0x28] sm:$0xff] %vm1089, %v1062
  %1096 = vst.msk [vmem:[%s3 + $0x30] sm:$0xff] %vm1089, %v1063
  %1097 = vst.msk [vmem:[%s3 + $0x38] sm:$0xff] %vm1089, %v1064
  %1098 = vst.msk [vmem:[%s3 + $0x40] sm:$0xff] %vm1089, %v1065
  %1099 = vst.msk [vmem:[%s3 + $0x48] sm:$0xff] %vm1089, %v1066
  %1100 = vst.msk [vmem:[%s3 + $0x50] sm:$0xff] %vm1089, %v1067
  %1101 = vst.msk [vmem:[%s3 + $0x58] sm:$0xff] %vm1089, %v1068
  %1102 = vst.msk [vmem:[%s3 + $0x60] sm:$0xff] %vm1089, %v1069
  %1103 = vst.msk [vmem:[%s3 + $0x68] sm:$0xff] %vm1089, %v1070
  %1104 = vst.msk [vmem:[%s3 + $0x70] sm:$0xff] %vm1089, %v1071
  %1105 = vst.msk [vmem:[%s3 + $0x78] sm:$0xff] %vm1089, %v1072
  %1106 = vst.msk [vmem:[%s3 + $0x80] sm:$0xff] %vm1089, %v1073
  %1107 = vst.msk [vmem:[%s3 + $0x88] sm:$0xff] %vm1089, %v1074
  %1108 = vst.msk [vmem:[%s3 + $0x90] sm:$0xff] %vm1089, %v1075
  %1109 = vst.msk [vmem:[%s3 + $0x98] sm:$0xff] %vm1089, %v1076
  %1110 = vst.msk [vmem:[%s3 + $0xa0] sm:$0xff] %vm1089, %v1077
  %1111 = vst.msk [vmem:[%s3 + $0xa8] sm:$0xff] %vm1089, %v1078
  %1112 = vst.msk [vmem:[%s3 + $0xb0] sm:$0xff] %vm1089, %v1079
  %1113 = vst.msk [vmem:[%s3 + $0xb8] sm:$0xff] %vm1089, %v1080
  %1114 = vst.msk [vmem:[%s3 + $0xc0] sm:$0xff] %vm1089, %v1081
  %1115 = vst.msk [vmem:[%s3 + $0xc8] sm:$0xff] %vm1089, %v1082
  %1116 = vst.msk [vmem:[%s3 + $0xd0] sm:$0xff] %vm1089, %v1083
  %1117 = vst.msk [vmem:[%s3 + $0xd8] sm:$0xff] %vm1089, %v1084
  %1118 = vst.msk [vmem:[%s3 + $0xe0] sm:$0xff] %vm1089, %v1085
  %1119 = vst.msk [vmem:[%s3 + $0xe8] sm:$0xff] %vm1089, %v1086
  %1120 = vst.msk [vmem:[%s3 + $0xf0] sm:$0xff] %vm1089, %v1087
  %1121 = vst.msk [vmem:[%s3 + $0xf8] sm:$0xff] %vm1089, %v1088
  // Predicated region
  $region14: #{tpu_custom_call.1} parent=0 // pred_check
    _
  $region15: #{tpu_custom_call.1} parent=0 // pred_check_branch
    %1123 = sbr.rel (0) target = $region17
  $region16: #{tpu_custom_call.1} parent=0 // pred_region
    _
  $region17: #{tpu_custom_call.1} parent=0 // pred_fallthru
    _
  // Predicated region
  $region18: #{tpu_custom_call.1} parent=0 // pred_check
    _
  $region19: #{tpu_custom_call.1} parent=0 // pred_check_branch
    %1125 = sbr.rel (0) target = $region21
  $region20: #{tpu_custom_call.1} parent=0 // pred_region
    _
  $region21: #{tpu_custom_call.1} parent=0 // pred_fallthru
    _

</llo_original>
